<compile_context>
chip_gen: v6e
topology: v6e:2x2x1
jax: 0.10.0
libtpu: 0.0.40
codegen_flags: <defaults>
</compile_context>

<pallas_src>
import functools

import jax
import jax.numpy as jnp
from jax.experimental import pallas as pl
from jax.experimental.pallas import tpu as pltpu


def _round_up(x: int, m: int) -> int:
    return ((x + m - 1) // m) * m


def _cdiv(a: int, b: int) -> int:
    return -(-a // b)


def _pick_tiles(extent: int, granule: int, max_tile: int, min_splits: int = 1):
    """Balanced tile choice: tile*count covers round_up(extent, granule) with
    at most ~one granule of padding per axis (instead of rounding the whole
    extent up to a clamped max tile)."""
    aligned = _round_up(max(extent, 1), granule)
    n = max(min_splits, _cdiv(aligned, max_tile))
    tile = _round_up(_cdiv(aligned, n), granule)
    n = _cdiv(aligned, tile)
    return tile, tile * n, n


def _lora_kernel(x_ref, b_ref, a_ref, o_ref, xb_acc, *, tk, b_resident):
    """out = (x @ B) @ (alpha*A), tiled over M (parallel) and K (reduction).

    xb_acc: VMEM f32 accumulator for the low-rank intermediate, resident
    across the K grid axis.  At the last K step the tiny-contraction matmul
    against the pre-scaled A produces the full output row-block.
    """
    k = pl.program_id(1)

    @pl.when(k == 0)
    def _():
        xb_acc[...] = jnp.zeros_like(xb_acc)

    if b_resident:
        # B lives fully in VMEM (fetched once for the whole grid); slice the
        # current K chunk out of it.
        off = pl.multiple_of(k * tk, tk)
        b_tile = b_ref[pl.ds(off, tk), :]
    else:
        b_tile = b_ref[...]

    # Native-dtype operands straight to the MXU, f32 accumulation.
    xb_acc[...] += jnp.dot(x_ref[...], b_tile,
                           preferred_element_type=jnp.float32)

    @pl.when(k == pl.num_programs(1) - 1)
    def _():
        # NOTE: the low-rank intermediate is cast back to the operand dtype
        # before the second matmul (matches a plain dtype x@B@A chain).
        o_ref[...] = jnp.dot(
            xb_acc[...].astype(a_ref.dtype), a_ref[...],
            preferred_element_type=jnp.float32,
        ).astype(o_ref.dtype)


def lora_forward(x, matrix_b, matrix_a, alpha, *, tm_max=512, tk_max=1024):
    """alpha * x @ matrix_b @ matrix_a via the fused Pallas kernel.

    x:        (batch, input_dim)
    matrix_b: (input_dim, rank)
    matrix_a: (rank, output_dim)
    alpha:    python float / scalar
    """
    batch, input_dim = x.shape
    rank, output_dim = matrix_a.shape
    assert matrix_b.shape == (input_dim, rank)

    dtype = x.dtype
    itemsize = jnp.dtype(dtype).itemsize
    # Sublane packing granule: 8 for f32, 16 for bf16, 32 for int8/fp8.
    sub = max(8, 32 // itemsize)

    # Fold alpha into A once in the wrapper (removes a per-tile VPU scale).
    a_scaled = (matrix_a.astype(jnp.float32) * float(alpha)).astype(dtype)
    b = matrix_b.astype(dtype)

    r_pad = _round_up(rank, 128)          # lane-dense low-rank intermediate
    n_pad = _round_up(output_dim, 128)    # lane-dense output tile

    # Per-generation VMEM budget (128 MiB on v5e/v6e, 64 MiB on v7x).
    try:
        phys_vmem = int(pltpu.get_tpu_info().vmem_capacity_bytes)
    except Exception:
        phys_vmem = 64 * 1024 * 1024       # conservative fallback
    vmem_budget = int(phys_vmem * 0.6)
    vmem_limit = int(min(phys_vmem * 0.75, 100 * 1024 * 1024))

    # >= 2 M tiles when the batch permits, so the parallel axis has work for
    # both v7x TensorCores.
    m_min_splits = 2 if batch > 16 else 1

    tm_cap, tk_cap = tm_max, tk_max
    while True:
        tm, m_pad, n_m = _pick_tiles(batch, sub, tm_cap, m_min_splits)
        tk, k_pad, n_k = _pick_tiles(input_dim, 128, tk_cap)
        # Keep the whole (padded) B resident in VMEM when it is small.
        b_resident = (2 * k_pad * r_pad * itemsize
                      <= min(8 * 1024 * 1024, vmem_budget // 3))
        est = (2 * tm * tk * itemsize                                      # x (dbl-buffered)
               + (2 * k_pad if b_resident else 2 * tk) * r_pad * itemsize  # B
               + 2 * r_pad * n_pad * itemsize                              # alpha*A
               + 2 * tm * n_pad * itemsize                                 # out
               + tm * r_pad * 4)                                           # f32 accumulator
        if est <= vmem_budget or (tk_cap <= 256 and tm_cap <= max(sub, 64)):
            break
        if tk_cap > 256:
            tk_cap //= 2
        else:
            tm_cap //= 2

    # Pad only when actually needed (aligned shapes skip the x copy and its
    # extra HBM round-trip entirely; otherwise the pad is <= one granule).
    if (m_pad, k_pad) != (batch, input_dim):
        x_p = jnp.pad(x, ((0, m_pad - batch), (0, k_pad - input_dim)))
    else:
        x_p = x
    b_p = jnp.pad(b, ((0, k_pad - input_dim), (0, r_pad - rank)))
    a_p = jnp.pad(a_scaled, ((0, r_pad - rank), (0, n_pad - output_dim)))

    if b_resident:
        b_spec = pl.BlockSpec((k_pad, r_pad), lambda i, k: (0, 0))
    else:
        b_spec = pl.BlockSpec((tk, r_pad), lambda i, k: (k, 0))

    kernel = functools.partial(_lora_kernel, tk=tk, b_resident=b_resident)

    out = pl.pallas_call(
        kernel,
        out_shape=jax.ShapeDtypeStruct((m_pad, n_pad), dtype),
        grid_spec=pltpu.PrefetchScalarGridSpec(
            num_scalar_prefetch=0,
            grid=(n_m, n_k),
            in_specs=[
                pl.BlockSpec((tm, tk), lambda i, k: (i, k)),        # x tile
                b_spec,                                             # B
                pl.BlockSpec((r_pad, n_pad), lambda i, k: (0, 0)),  # alpha*A (resident)
            ],
            out_specs=pl.BlockSpec((tm, n_pad), lambda i, k: (i, 0)),
            scratch_shapes=[pltpu.VMEM((tm, r_pad), jnp.float32)],
        ),
        compiler_params=pltpu.CompilerParams(
            dimension_semantics=("parallel", "arbitrary"),
            vmem_limit_bytes=vmem_limit,
        ),
    )(x_p, b_p, a_p)

    if (m_pad, n_pad) != (batch, output_dim):
        out = out[:batch, :output_dim]
    return out


def _check(batch, input_dim, output_dim, rank, alpha, key):
    k1, k2, k3 = jax.random.split(key, 3)
    x = jax.random.normal(k1, (batch, input_dim), dtype=jnp.float32)
    # NOTE: PyTorch inits matrix_a to zeros; use small random values here so
    # the LoRA matmul path is numerically exercised.
    matrix_b = jax.random.uniform(k2, (input_dim, rank), dtype=jnp.float32)
    matrix_a = jax.random.normal(k3, (rank, output_dim), dtype=jnp.float32) * 0.05

    out = jax.block_until_ready(lora_forward(x, matrix_b, matrix_a, alpha))
    ref = alpha * (x @ matrix_b) @ matrix_a
    assert out.shape == (batch, output_dim)
    assert jnp.allclose(out, ref, atol=1e-4, rtol=1e-4), (
        f"max abs err {jnp.max(jnp.abs(out - ref))}")


if __name__ == "__main__":
    key = jax.random.PRNGKey(0)
    k_a, k_b = jax.random.split(key)

    # Small shapes straight from the module config (rank << dims).
    _check(batch=8, input_dim=32, output_dim=32, rank=4, alpha=2.0, key=k_a)

    # Unaligned shapes, batch > 16 (forces >= 2 parallel M tiles), K padding,
    # and the VMEM-resident B path.
    _check(batch=24, input_dim=1000, output_dim=200, rank=6, alpha=0.5, key=k_b)

    print("KERNEL_OK")
</pallas_src>

<mosaic_0001>
module attributes {stable_mosaic.version = 11 : i64} {
  func.func @_lora_kernel(%arg0: i32, %arg1: i32, %arg2: memref<8x128xf32, #tpu.memory_space<vmem>>, %arg3: memref<128x128xf32, #tpu.memory_space<vmem>>, %arg4: memref<128x128xf32, #tpu.memory_space<vmem>>, %arg5: memref<8x128xf32, #tpu.memory_space<vmem>>, %arg6: memref<8x128xf32, #tpu.memory_space<vmem>>) attributes {dimension_semantics = [#tpu.dimension_semantics<parallel>, #tpu.dimension_semantics<arbitrary>], iteration_bounds = array<i64: 1, 1>, scalar_prefetch = 0 : i64, scratch_operands = 1 : i64, tpu.core_type = #tpu.core_type<tc>, window_params = [{transform_indices = @transform_0, window_bounds = array<i64: 8, 128>}, {pipeline_mode = #tpu.pipeline_mode<synchronous>, transform_indices = @transform_1, window_bounds = array<i64: 128, 128>}, {pipeline_mode = #tpu.pipeline_mode<synchronous>, transform_indices = @transform_2, window_bounds = array<i64: 128, 128>}, {transform_indices = @transform_3, window_bounds = array<i64: 8, 128>}]} {
    %c0_i32 = arith.constant 0 : i32
    %0 = arith.cmpi eq, %arg1, %c0_i32 : i32
    %1 = arith.extui %0 : i1 to i32
    %c0_i32_0 = arith.constant 0 : i32
    %2 = arith.cmpi ne, %1, %c0_i32_0 : i32
    scf.if %2 {
      %cst_9 = arith.constant 0.000000e+00 : f32
      %15 = vector.broadcast %cst_9 : f32 to vector<8x128xf32>
      %c0_10 = arith.constant 0 : index
      %c0_11 = arith.constant 0 : index
      %16 = vector.load %arg6[%c0_10, %c0_11] : memref<8x128xf32, #tpu.memory_space<vmem>>, vector<8x128xf32>
      tpu.vector_store %arg6[%c0_10, %c0_11], %15 {strides = array<i32>} : memref<8x128xf32, #tpu.memory_space<vmem>>, vector<8x128xf32>,
    } else {
    }
    %c128_i32 = arith.constant 128 : i32
    %3 = arith.muli %arg1, %c128_i32 : i32
    %4 = tpu.assume_multiple %3, 128 : i32
    %5 = arith.index_cast %4 : i32 to index
    %c0 = arith.constant 0 : index
    %6 = vector.load %arg3[%5, %c0] : memref<128x128xf32, #tpu.memory_space<vmem>>, vector<128x128xf32>
    %c0_1 = arith.constant 0 : index
    %c0_2 = arith.constant 0 : index
    %7 = vector.load %arg6[%c0_1, %c0_2] : memref<8x128xf32, #tpu.memory_space<vmem>>, vector<8x128xf32>
    %c0_3 = arith.constant 0 : index
    %c0_4 = arith.constant 0 : index
    %8 = vector.load %arg2[%c0_3, %c0_4] : memref<8x128xf32, #tpu.memory_space<vmem>>, vector<8x128xf32>
    %cst = arith.constant dense<0.000000e+00> : vector<8x128xf32>
    %9 = tpu.matmul %8, %6, %cst {dimension_numbers = #tpu.dot_dimension_numbers<[1], [0], [0], [1], [0, 0, 1, 1], [], []>} : vector<8x128xf32>, vector<128x128xf32>, vector<8x128xf32> -> vector<8x128xf32>
    %10 = arith.addf %7, %9 : vector<8x128xf32>
    %c0_5 = arith.constant 0 : index
    %c0_6 = arith.constant 0 : index
    %11 = vector.load %arg6[%c0_5, %c0_6] : memref<8x128xf32, #tpu.memory_space<vmem>>, vector<8x128xf32>
    tpu.vector_store %arg6[%c0_5, %c0_6], %10 {strides = array<i32>} : memref<8x128xf32, #tpu.memory_space<vmem>>, vector<8x128xf32>,
    %c0_i32_7 = arith.constant 0 : i32
    %12 = arith.cmpi eq, %arg1, %c0_i32_7 : i32
    %13 = arith.extui %12 : i1 to i32
    %c0_i32_8 = arith.constant 0 : i32
    %14 = arith.cmpi ne, %13, %c0_i32_8 : i32
    scf.if %14 {
      %c0_9 = arith.constant 0 : index
      %c0_10 = arith.constant 0 : index
      %15 = vector.load %arg6[%c0_9, %c0_10] : memref<8x128xf32, #tpu.memory_space<vmem>>, vector<8x128xf32>
      %c0_11 = arith.constant 0 : index
      %c0_12 = arith.constant 0 : index
      %16 = vector.load %arg4[%c0_11, %c0_12] : memref<128x128xf32, #tpu.memory_space<vmem>>, vector<128x128xf32>
      %cst_13 = arith.constant dense<0.000000e+00> : vector<8x128xf32>
      %17 = tpu.matmul %15, %16, %cst_13 {dimension_numbers = #tpu.dot_dimension_numbers<[1], [0], [0], [1], [0, 0, 1, 1], [], []>} : vector<8x128xf32>, vector<128x128xf32>, vector<8x128xf32> -> vector<8x128xf32>
      %c0_14 = arith.constant 0 : index
      %c0_15 = arith.constant 0 : index
      %18 = vector.load %arg5[%c0_14, %c0_15] : memref<8x128xf32, #tpu.memory_space<vmem>>, vector<8x128xf32>
      tpu.vector_store %arg5[%c0_14, %c0_15], %17 {strides = array<i32>} : memref<8x128xf32, #tpu.memory_space<vmem>>, vector<8x128xf32>,
    } else {
    }
    return
  }
  func.func @transform_0(%arg0: i32, %arg1: i32) -> (i32, i32) {
    %c0_i32 = arith.constant 0 : i32
    return %arg0, %arg1 : i32, i32
  }
  func.func @transform_1(%arg0: i32, %arg1: i32) -> (i32, i32) {
    %c0_i32 = arith.constant 0 : i32
    %c0_i32_0 = arith.constant 0 : i32
    %c0_i32_1 = arith.constant 0 : i32
    return %c0_i32, %c0_i32_0 : i32, i32
  }
  func.func @transform_2(%arg0: i32, %arg1: i32) -> (i32, i32) {
    %c0_i32 = arith.constant 0 : i32
    %c0_i32_0 = arith.constant 0 : i32
    %c0_i32_1 = arith.constant 0 : i32
    return %c0_i32, %c0_i32_0 : i32, i32
  }
  func.func @transform_3(%arg0: i32, %arg1: i32) -> (i32, i32) {
    %c0_i32 = arith.constant 0 : i32
    %c0_i32_0 = arith.constant 0 : i32
    return %arg0, %c0_i32 : i32, i32
  }
}

</mosaic_0001>

<llo_original>
// kernel: tpu_custom_call.1
$region0: #{tpu_custom_call.1}
  #allocation0 [shape = 'u32[]', space=smem, size = 0x4, offset = 0x4, fixed_abs, tag = 'smem constant byte address 0x4 - core index']
  #allocation1 [shape = 'u32[144,128]{1,0:T(1,128)}', space=vmem, size = 0x12000, scoped, tag = 'internal scratch']
  #allocation2 [shape = 'f32[8,128]{1,0:T(8,128)}', space=vmem, size = 0x1000, scoped, tag = 'scratch operand']
  %s0 = inlined_call_operand.hbm [shape: f32[8,128], index: 0, kind: input, shape index: {}]
  %s1 = inlined_call_operand.hbm [shape: f32[128,128], index: 1, kind: input, shape index: {}]
  %s2 = inlined_call_operand.hbm [shape: f32[128,128], index: 2, kind: input, shape index: {}]
  %s3 = inlined_call_operand.hbm [shape: f32[8,128], index: 3, kind: output, shape index: {}]
  %s4 = sld [smem:[#allocation0]]
  $region42: #{tpu_custom_call.1} parent=0
    _
  %s6 = ssub.s32 1, %s4
  %s7 = scalar_select 0, %s6, %s4
  $region1: #{tpu_custom_call.1} parent=0
    #allocation3 [shape = 'u8[4096]{0}', space=vmem, size = 0x1000, scoped, tag = 'input window, operand 0, single buffered']
    #allocation4 [shape = 's32[1]{0}', space=sflag, size = 0x4, scoped, tag = 'scoped memory for tpu_custom_call.1']
    #allocation5 [shape = 's32[1]{0}', space=sflag, size = 0x4, scoped, tag = 'scoped memory for tpu_custom_call.1']
    #allocation6 [shape = 'u8[65536]{0}', space=vmem, size = 0x10000, scoped, tag = 'input window, operand 1, single buffered']
    #allocation7 [shape = 's32[1]{0}', space=sflag, size = 0x4, scoped, tag = 'scoped memory for tpu_custom_call.1']
    #allocation8 [shape = 'u8[65536]{0}', space=vmem, size = 0x10000, scoped, tag = 'input window, operand 2, single buffered']
    #allocation9 [shape = 'u8[4096]{0}', space=vmem, size = 0x1000, scoped, tag = 'output window, operand 0, single buffered']
    %8 = vsyncpa [#allocation4], 0
    %9 = vsyncpa [#allocation7], 0
    %10 = vsyncpa [#allocation5], 0
    // Predicated region
    $region2: #{tpu_custom_call.1} parent=1 // pred_check
      _
    $region3: #{tpu_custom_call.1} parent=1 // pred_check_branch
      %12 = sbr.rel (0) target = $region5
    $region4: #{tpu_custom_call.1} parent=1 // pred_region
      %s14 = ssub.s32 128, 128
      %15 = vsyncadd [#allocation4], %s14
      %s17 = sshll.u32 [#allocation3], 4
      %s18 = int_to_ptr.vmem [resolvable:$true] %s17
      %20 = dma.hbm_to_vmem [thread:$0]  %s0, 128, %s18, [#allocation4]
    $region5: #{tpu_custom_call.1} parent=1 // pred_fallthru
      _
    // Predicated region
    $region6: #{tpu_custom_call.1} parent=1 // pred_check
      _
    $region7: #{tpu_custom_call.1} parent=1 // pred_check_branch
      %22 = sbr.rel (0) target = $region9
    $region8: #{tpu_custom_call.1} parent=1 // pred_region
      %s24 = ssub.s32 2048, 2048
      %25 = vsyncadd [#allocation7], %s24
      %s26 = sshll.u32 [#allocation6], 4
      %s27 = int_to_ptr.vmem [resolvable:$true] %s26
      %32 = dma.hbm_to_vmem [thread:$0]  %s1, 2048, %s27, [#allocation7], 128, 128, 8
    $region9: #{tpu_custom_call.1} parent=1 // pred_fallthru
      _
    // Predicated region
    $region10: #{tpu_custom_call.1} parent=1 // pred_check
      _
    $region11: #{tpu_custom_call.1} parent=1 // pred_check_branch
      %34 = sbr.rel (0) target = $region13
    $region12: #{tpu_custom_call.1} parent=1 // pred_region
      %s36 = ssub.s32 2048, 2048
      %37 = vsyncadd [#allocation7], %s36
      %s38 = sshll.u32 [#allocation8], 4
      %s39 = int_to_ptr.vmem [resolvable:$true] %s38
      %44 = dma.hbm_to_vmem [thread:$0]  %s2, 2048, %s39, [#allocation7], 128, 128, 8
    $region13: #{tpu_custom_call.1} parent=1 // pred_fallthru
      _
    // Predicated region
    $region14: #{tpu_custom_call.1} parent=1 // pred_check
      _
    $region15: #{tpu_custom_call.1} parent=1 // pred_check_branch
      %46 = sbr.rel (0) target = $region17
    $region16: #{tpu_custom_call.1} parent=1 // pred_region
      %47 = dma.done [#allocation4], 128
    $region17: #{tpu_custom_call.1} parent=1 // pred_fallthru
      _
    // Predicated region
    $region18: #{tpu_custom_call.1} parent=1 // pred_check
      _
    $region19: #{tpu_custom_call.1} parent=1 // pred_check_branch
      %49 = sbr.rel (0) target = $region21
    $region20: #{tpu_custom_call.1} parent=1 // pred_region
      %50 = dma.done [#allocation7], 2048
    $region21: #{tpu_custom_call.1} parent=1 // pred_fallthru
      _
    // Predicated region
    $region22: #{tpu_custom_call.1} parent=1 // pred_check
      _
    $region23: #{tpu_custom_call.1} parent=1 // pred_check_branch
      %52 = sbr.rel (0) target = $region25
    $region24: #{tpu_custom_call.1} parent=1 // pred_region
      %53 = dma.done [#allocation7], 2048
    $region25: #{tpu_custom_call.1} parent=1 // pred_fallthru
      _
    %p54 = scmp.eq.s32.totalorder 0, 0
    // Predicated region
    $region26: #{tpu_custom_call.1} parent=1 // pred_check
      %p55 = pneg %p54
    $region27: #{tpu_custom_call.1} parent=1 // pred_check_branch
      %57 = sbr.rel (%p55) target = $region29
    $region28: #{tpu_custom_call.1} parent=1 // pred_region
      %58 = vst [vmem:[#allocation2] sm:$0xff] 0.0
    $region29: #{tpu_custom_call.1} parent=1 // pred_fallthru
      _
    %s59 = smul.u32 0, 128
    %s60 = scalar_lea.vmem [#allocation6], %s59
    %v61 = vld [vmem:[%s60] sm:$0xff]
    %v62 = vld [vmem:[%s60 + $0x8] sm:$0xff]
    %v63 = vld [vmem:[%s60 + $0x10] sm:$0xff]
    %v64 = vld [vmem:[%s60 + $0x18] sm:$0xff]
    %v65 = vld [vmem:[%s60 + $0x20] sm:$0xff]
    %v66 = vld [vmem:[%s60 + $0x28] sm:$0xff]
    %v67 = vld [vmem:[%s60 + $0x30] sm:$0xff]
    %v68 = vld [vmem:[%s60 + $0x38] sm:$0xff]
    %v69 = vld [vmem:[%s60 + $0x40] sm:$0xff]
    %v70 = vld [vmem:[%s60 + $0x48] sm:$0xff]
    %v71 = vld [vmem:[%s60 + $0x50] sm:$0xff]
    %v72 = vld [vmem:[%s60 + $0x58] sm:$0xff]
    %v73 = vld [vmem:[%s60 + $0x60] sm:$0xff]
    %v74 = vld [vmem:[%s60 + $0x68] sm:$0xff]
    %v75 = vld [vmem:[%s60 + $0x70] sm:$0xff]
    %v76 = vld [vmem:[%s60 + $0x78] sm:$0xff]
    %v77 = vld [vmem:[#allocation2] sm:$0xff]
    %v78 = vld [vmem:[#allocation3] sm:$0xff]
    %79 = vmatprep.subr.mxu0 0.0
    %80 = vmatpush1.msra.mxu0 %v76
    %81 = vmatprep.subr.mxu0 0.0
    %82 = vmatpush1.msra.mxu0 %v75
    %83 = vmatprep.subr.mxu0 0.0
    %84 = vmatpush1.msra.mxu0 %v74
    %85 = vmatprep.subr.mxu0 0.0
    %86 = vmatpush1.msra.mxu0 %v73
    %87 = vmatprep.subr.mxu0 0.0
    %88 = vmatpush1.msra.mxu0 %v72
    %89 = vmatprep.subr.mxu0 0.0
    %90 = vmatpush1.msra.mxu0 %v71
    %91 = vmatprep.subr.mxu0 0.0
    %92 = vmatpush1.msra.mxu0 %v70
    %93 = vmatprep.subr.mxu0 0.0
    %94 = vmatpush1.msra.mxu0 %v69
    %95 = vmatprep.subr.mxu0 0.0
    %96 = vmatpush1.msra.mxu0 %v68
    %97 = vmatprep.subr.mxu0 0.0
    %98 = vmatpush1.msra.mxu0 %v67
    %99 = vmatprep.subr.mxu0 0.0
    %100 = vmatpush1.msra.mxu0 %v66
    %101 = vmatprep.subr.mxu0 0.0
    %102 = vmatpush1.msra.mxu0 %v65
    %103 = vmatprep.subr.mxu0 0.0
    %104 = vmatpush1.msra.mxu0 %v64
    %105 = vmatprep.subr.mxu0 0.0
    %106 = vmatpush1.msra.mxu0 %v63
    %107 = vmatprep.subr.mxu0 0.0
    %108 = vmatpush1.msra.mxu0 %v62
    %109 = vmatprep.subr.mxu0 0.0
    %110 = vmatpush1.msra.mxu0 %v61
    %111 = vmatprep.subr.mxu0 0.0
    %112 = vmatpush2.msra.mxu0 0.0
    %113 = vmatprep.subr.mxu0 0.0
    %114 = vmatpush2.msra.mxu0 0.0
    %115 = vmatprep.subr.mxu0 0.0
    %116 = vmatpush2.msra.mxu0 0.0
    %117 = vmatprep.subr.mxu0 0.0
    %118 = vmatpush2.msra.mxu0 0.0
    %119 = vmatprep.subr.mxu0 0.0
    %120 = vmatpush2.msra.mxu0 0.0
    %121 = vmatprep.subr.mxu0 0.0
    %122 = vmatpush2.msra.mxu0 0.0
    %123 = vmatprep.subr.mxu0 0.0
    %124 = vmatpush2.msra.mxu0 0.0
    %125 = vmatprep.subr.mxu0 0.0
    %126 = vmatpush2.msra.mxu0 0.0
    %127 = vmatprep.subr.mxu0 0.0
    %128 = vmatpush2.msra.mxu0 0.0
    %129 = vmatprep.subr.mxu0 0.0
    %130 = vmatpush2.msra.mxu0 0.0
    %131 = vmatprep.subr.mxu0 0.0
    %132 = vmatpush2.msra.mxu0 0.0
    %133 = vmatprep.subr.mxu0 0.0
    %134 = vmatpush2.msra.mxu0 0.0
    %135 = vmatprep.subr.mxu0 0.0
    %136 = vmatpush2.msra.mxu0 0.0
    %137 = vmatprep.subr.mxu0 0.0
    %138 = vmatpush2.msra.mxu0 0.0
    %139 = vmatprep.subr.mxu0 0.0
    %140 = vmatpush2.msra.mxu0 0.0
    %141 = vmatprep.subr.mxu0 0.0
    %142 = vmatpush2.msra.mxu0 0.0
    %143 = vmatprep.mubr.f32.mxu0 0.0
    %144 = vmatmul.mubr.f32.gmra.mxu0 %v78
    %v145 = vpop.f32.mrf.mxu0
    %v146 = vadd.f32 0.0, %v145
    %v147 = vpop.f32.mrf.mxu0
    %148 = vdwg.mxu0
    %v149 = vadd.f32 %v77, %v146
    %150 = vst [vmem:[#allocation2] sm:$0xff] %v149
    // Predicated region
    $region30: #{tpu_custom_call.1} parent=1 // pred_check
      %p151 = pneg %p54
    $region31: #{tpu_custom_call.1} parent=1 // pred_check_branch
      %153 = sbr.rel (%p151) target = $region33
    $region32: #{tpu_custom_call.1} parent=1 // pred_region
      %v154 = vld [vmem:[#allocation2] sm:$0xff]
      %v155 = vld [vmem:[#allocation8] sm:$0xff]
      %v156 = vld [vmem:[#allocation8 + $0x8] sm:$0xff]
      %v157 = vld [vmem:[#allocation8 + $0x10] sm:$0xff]
      %v158 = vld [vmem:[#allocation8 + $0x18] sm:$0xff]
      %v159 = vld [vmem:[#allocation8 + $0x20] sm:$0xff]
      %v160 = vld [vmem:[#allocation8 + $0x28] sm:$0xff]
      %v161 = vld [vmem:[#allocation8 + $0x30] sm:$0xff]
      %v162 = vld [vmem:[#allocation8 + $0x38] sm:$0xff]
      %v163 = vld [vmem:[#allocation8 + $0x40] sm:$0xff]
      %v164 = vld [vmem:[#allocation8 + $0x48] sm:$0xff]
      %v165 = vld [vmem:[#allocation8 + $0x50] sm:$0xff]
      %v166 = vld [vmem:[#allocation8 + $0x58] sm:$0xff]
      %v167 = vld [vmem:[#allocation8 + $0x60] sm:$0xff]
      %v168 = vld [vmem:[#allocation8 + $0x68] sm:$0xff]
      %v169 = vld [vmem:[#allocation8 + $0x70] sm:$0xff]
      %v170 = vld [vmem:[#allocation8 + $0x78] sm:$0xff]
      %171 = vmatprep.subr.mxu0 0.0
      %172 = vmatpush1.msra.mxu0 %v170
      %173 = vmatprep.subr.mxu0 0.0
      %174 = vmatpush1.msra.mxu0 %v169
      %175 = vmatprep.subr.mxu0 0.0
      %176 = vmatpush1.msra.mxu0 %v168
      %177 = vmatprep.subr.mxu0 0.0
      %178 = vmatpush1.msra.mxu0 %v167
      %179 = vmatprep.subr.mxu0 0.0
      %180 = vmatpush1.msra.mxu0 %v166
      %181 = vmatprep.subr.mxu0 0.0
      %182 = vmatpush1.msra.mxu0 %v165
      %183 = vmatprep.subr.mxu0 0.0
      %184 = vmatpush1.msra.mxu0 %v164
      %185 = vmatprep.subr.mxu0 0.0
      %186 = vmatpush1.msra.mxu0 %v163
      %187 = vmatprep.subr.mxu0 0.0
      %188 = vmatpush1.msra.mxu0 %v162
      %189 = vmatprep.subr.mxu0 0.0
      %190 = vmatpush1.msra.mxu0 %v161
      %191 = vmatprep.subr.mxu0 0.0
      %192 = vmatpush1.msra.mxu0 %v160
      %193 = vmatprep.subr.mxu0 0.0
      %194 = vmatpush1.msra.mxu0 %v159
      %195 = vmatprep.subr.mxu0 0.0
      %196 = vmatpush1.msra.mxu0 %v158
      %197 = vmatprep.subr.mxu0 0.0
      %198 = vmatpush1.msra.mxu0 %v157
      %199 = vmatprep.subr.mxu0 0.0
      %200 = vmatpush1.msra.mxu0 %v156
      %201 = vmatprep.subr.mxu0 0.0
      %202 = vmatpush1.msra.mxu0 %v155
      %203 = vmatprep.subr.mxu0 0.0
      %204 = vmatpush2.msra.mxu0 0.0
      %205 = vmatprep.subr.mxu0 0.0
      %206 = vmatpush2.msra.mxu0 0.0
      %207 = vmatprep.subr.mxu0 0.0
      %208 = vmatpush2.msra.mxu0 0.0
      %209 = vmatprep.subr.mxu0 0.0
      %210 = vmatpush2.msra.mxu0 0.0
      %211 = vmatprep.subr.mxu0 0.0
      %212 = vmatpush2.msra.mxu0 0.0
      %213 = vmatprep.subr.mxu0 0.0
      %214 = vmatpush2.msra.mxu0 0.0
      %215 = vmatprep.subr.mxu0 0.0
      %216 = vmatpush2.msra.mxu0 0.0
      %217 = vmatprep.subr.mxu0 0.0
      %218 = vmatpush2.msra.mxu0 0.0
      %219 = vmatprep.subr.mxu0 0.0
      %220 = vmatpush2.msra.mxu0 0.0
      %221 = vmatprep.subr.mxu0 0.0
      %222 = vmatpush2.msra.mxu0 0.0
      %223 = vmatprep.subr.mxu0 0.0
      %224 = vmatpush2.msra.mxu0 0.0
      %225 = vmatprep.subr.mxu0 0.0
      %226 = vmatpush2.msra.mxu0 0.0
      %227 = vmatprep.subr.mxu0 0.0
      %228 = vmatpush2.msra.mxu0 0.0
      %229 = vmatprep.subr.mxu0 0.0
      %230 = vmatpush2.msra.mxu0 0.0
      %231 = vmatprep.subr.mxu0 0.0
      %232 = vmatpush2.msra.mxu0 0.0
      %233 = vmatprep.subr.mxu0 0.0
      %234 = vmatpush2.msra.mxu0 0.0
      %235 = vmatprep.mubr.f32.mxu0 0.0
      %236 = vmatmul.mubr.f32.gmra.mxu0 %v154
      %v237 = vpop.f32.mrf.mxu0
      %v238 = vadd.f32 0.0, %v237
      %v239 = vpop.f32.mrf.mxu0
      %240 = vdwg.mxu0
      %241 = vst [vmem:[#allocation9] sm:$0xff] %v238
    $region33: #{tpu_custom_call.1} parent=1 // pred_fallthru
      _
    // Predicated region
    $region34: #{tpu_custom_call.1} parent=1 // pred_check
      _
    $region35: #{tpu_custom_call.1} parent=1 // pred_check_branch
      %243 = sbr.rel (0) target = $region37
    $region36: #{tpu_custom_call.1} parent=1 // pred_region
      %s245 = ssub.s32 128, 128
      %246 = vsyncadd [#allocation5], %s245
      %s248 = sshll.u32 [#allocation9], 4
      %s249 = int_to_ptr.vmem [resolvable:$true] %s248
      %251 = dma.vmem_to_hbm [thread:$0]  %s249, 128, %s3, [#allocation5]
    $region37: #{tpu_custom_call.1} parent=1 // pred_fallthru
      _
    // Predicated region
    $region38: #{tpu_custom_call.1} parent=1 // pred_check
      _
    $region39: #{tpu_custom_call.1} parent=1 // pred_check_branch
      %253 = sbr.rel (0) target = $region41
    $region40: #{tpu_custom_call.1} parent=1 // pred_region
      %254 = dma.done [#allocation5], 128
    $region41: #{tpu_custom_call.1} parent=1 // pred_fallthru
      _
    %255 = vsyncpa [#allocation4], 1
    %256 = vsyncpa [#allocation7], 1
    %257 = vsyncpa [#allocation5], 1

</llo_original>
